<compile_context>
chip_gen: v5e
topology: v5e:2x2
jax: 0.10.0
libtpu: 0.0.40
codegen_flags: <defaults>
</compile_context>

<pallas_src>
import functools

import jax
import jax.numpy as jnp
from jax import lax
from jax.experimental import pallas as pl
from jax.experimental.pallas import tpu as pltpu


# --------------------------------------------------------------------------
# Pallas kernel: fused SAModule_Head conv (+bias +ReLU) on one image.
#   x_ref  : (1, H, W*Cin)        f32  input slab (lane-dense)
#   t_ref  : (7, W*Cin, W*Cout)   bf16 block-Toeplitz weights (one per dy)
#   b_ref  : (1, W*Cout)          f32  bias, pre-tiled to the lane layout
#   o_ref  : (1, H, W*Cout)       f32  output slab (lane-dense)
#   xp_ref : (H+6, W*Cin)         bf16 VMEM scratch, H-padded copy of x
# --------------------------------------------------------------------------
def _fused_head_kernel(x_ref, t_ref, b_ref, o_ref, xp_ref):
    h = x_ref.shape[1]
    k = t_ref.shape[0]                       # 7 kernel rows
    pad = (xp_ref.shape[0] - h) // 2         # 3
    wc_out = o_ref.shape[2]

    # In-kernel 'same' padding along H (W padding is folded into T).
    # Cast to bf16 exactly once here.
    xp_ref[...] = jnp.zeros_like(xp_ref)
    xp_ref[pad:pad + h, :] = x_ref[0].astype(xp_ref.dtype)

    # 7 MXU matmuls, f32 register accumulator of shape (H, W*Cout) (~4 vregs).
    acc = jnp.zeros((h, wc_out), jnp.float32)
    for dy in range(k):                      # static, unrolled
        acc = acc + jnp.dot(
            xp_ref[dy:dy + h, :], t_ref[dy],
            preferred_element_type=jnp.float32,
        )

    acc = acc + b_ref[...]                   # (1, W*Cout) broadcast over rows
    o_ref[0] = jnp.maximum(acc, 0.0)         # ReLU, lane-dense store


# --------------------------------------------------------------------------
# Weight preprocessing (trace-time, constant-folded by XLA):
#  1) embed each branch kernel into a zero-padded 7x7 kernel, concat on Cout
#  2) build per-dy block-Toeplitz matmul weights for the (W*C) lane layout
# --------------------------------------------------------------------------
def _build_fused_params(params, w_img):
    branches = (("b1x1", 1), ("b3x3", 3), ("b5x5", 5), ("b7x7", 7))
    cin = params["b1x1"][0].shape[2]

    w7_blocks, biases = [], []
    for name, k in branches:
        wk, bk = params[name]
        off = (7 - k) // 2
        bo = wk.shape[-1]
        wk7 = jnp.zeros((7, 7, cin, bo), jnp.float32)
        wk7 = wk7.at[off:off + k, off:off + k].set(wk)
        w7_blocks.append(wk7)
        biases.append(bk)
    w7 = jnp.concatenate(w7_blocks, axis=-1)          # (7, 7, Cin, Cout)
    bias = jnp.concatenate(biases, axis=-1)           # (Cout,)
    cout = w7.shape[-1]

    # T[dy, wi*Cin + c, wo*Cout + o] = W7[dy, wi - wo + 3, c, o]  (else 0).
    wi = jnp.arange(w_img)[:, None]
    wo = jnp.arange(w_img)[None, :]
    dx = wi - wo + 3                                  # (Wi, Wo)
    valid = (dx >= 0) & (dx <= 6)
    dx_c = jnp.clip(dx, 0, 6)
    t = w7[:, dx_c]                                   # (7, Wi, Wo, Cin, Cout)
    t = jnp.where(valid[None, :, :, None, None], t, 0.0)
    t = t.transpose(0, 1, 3, 2, 4).reshape(7, w_img * cin, w_img * cout)
    t = t.astype(jnp.bfloat16)                        # bf16 MXU operands

    b_tiled = jnp.tile(bias, w_img).reshape(1, w_img * cout)  # lane-dense bias
    return t, b_tiled, cout


# --------------------------------------------------------------------------
# Forward.  Input/output are NCHW to match the PyTorch module.
# --------------------------------------------------------------------------
def sa_module_head_forward(params, x_nchw):
    n, cin, h, w = x_nchw.shape
    # NCHW -> NHWC -> lane-dense (N, H, W*Cin)
    x = jnp.transpose(x_nchw, (0, 2, 3, 1)).reshape(n, h, w * cin)

    t, b_tiled, cout = _build_fused_params(params, w)
    wc_in = w * cin
    wc_out = w * cout

    out2d = pl.pallas_call(
        _fused_head_kernel,
        out_shape=jax.ShapeDtypeStruct((n, h, wc_out), jnp.float32),
        grid_spec=pltpu.PrefetchScalarGridSpec(
            num_scalar_prefetch=0,
            grid=(n,),
            in_specs=[
                pl.BlockSpec((1, h, wc_in), lambda i: (i, 0, 0)),
                pl.BlockSpec((7, wc_in, wc_out), lambda i: (0, 0, 0)),
                pl.BlockSpec((1, wc_out), lambda i: (0, 0)),
            ],
            out_specs=pl.BlockSpec((1, h, wc_out), lambda i: (i, 0, 0)),
            scratch_shapes=[pltpu.VMEM((h + 6, wc_in), jnp.bfloat16)],
        ),
        compiler_params=pltpu.CompilerParams(
            dimension_semantics=("parallel",)),
    )(x, t, b_tiled)

    out = out2d.reshape(n, h, w, cout)
    return jnp.transpose(out, (0, 3, 1, 2))           # NHWC -> NCHW


# --------------------------------------------------------------------------
# Deterministic parameter init (PyTorch Conv2d-style uniform bounds).
# --------------------------------------------------------------------------
def _init_conv(key, k, cin, cout):
    kw, kb = jax.random.split(key)
    bound = (cin * k * k) ** -0.5
    w = jax.random.uniform(kw, (k, k, cin, cout), jnp.float32, -bound, bound)
    b = jax.random.uniform(kb, (cout,), jnp.float32, -bound, bound)
    return w, b


def sa_module_head_init(key, in_channels, out_channels):
    bo = out_channels // 4
    ks = jax.random.split(key, 4)
    return {
        "b1x1": _init_conv(ks[0], 1, in_channels, bo),
        "b3x3": _init_conv(ks[1], 3, in_channels, bo),
        "b5x5": _init_conv(ks[2], 5, in_channels, bo),
        "b7x7": _init_conv(ks[3], 7, in_channels, bo),
    }


# --------------------------------------------------------------------------
# Pure-JAX reference (lax conv, f32) for correctness verification.
# --------------------------------------------------------------------------
def _conv_ref(x_nhwc, w, b, pad):
    y = lax.conv_general_dilated(
        x_nhwc, w, window_strides=(1, 1),
        padding=[(pad, pad), (pad, pad)],
        dimension_numbers=("NHWC", "HWIO", "NHWC"),
    )
    return jnp.maximum(y + b, 0.0)


def _sa_head_ref(params, x_nchw):
    x = jnp.transpose(x_nchw, (0, 2, 3, 1))
    outs = []
    for name, k in (("b1x1", 1), ("b3x3", 3), ("b5x5", 5), ("b7x7", 7)):
        w, b = params[name]
        outs.append(_conv_ref(x, w, b, k // 2))
    return jnp.transpose(jnp.concatenate(outs, axis=-1), (0, 3, 1, 2))


if __name__ == "__main__":
    key = jax.random.PRNGKey(0)
    k_param, k_x = jax.random.split(key)

    N, C_IN, C_OUT, H, W = 2, 8, 16, 16, 16
    params = sa_module_head_init(k_param, C_IN, C_OUT)
    x = jax.random.normal(k_x, (N, C_IN, H, W), jnp.float32)

    fwd = jax.jit(functools.partial(sa_module_head_forward, params))
    out = jax.block_until_ready(fwd(x))
    assert out.shape == (N, C_OUT, H, W), out.shape

    ref = jax.block_until_ready(_sa_head_ref(params, x))
    # Tolerance sized for bf16 MXU operands with f32 accumulation.
    max_err = float(jnp.max(jnp.abs(out - ref)))
    assert jnp.allclose(out, ref, atol=2e-2, rtol=2e-2), max_err

    print("KERNEL_OK")
</pallas_src>

<mosaic_0001>
module attributes {stable_mosaic.version = 11 : i64} {
  func.func @_fused_head_kernel(%arg0: i32, %arg1: memref<1x16x128xf32, #tpu.memory_space<vmem>>, %arg2: memref<7x128x256xbf16, #tpu.memory_space<vmem>>, %arg3: memref<1x256xf32, #tpu.memory_space<vmem>>, %arg4: memref<1x16x256xf32, #tpu.memory_space<vmem>>, %arg5: memref<22x128xbf16, #tpu.memory_space<vmem>>) attributes {dimension_semantics = [#tpu.dimension_semantics<parallel>], iteration_bounds = array<i64: 2>, scalar_prefetch = 0 : i64, scratch_operands = 1 : i64, tpu.core_type = #tpu.core_type<tc>, window_params = [{transform_indices = @transform_0, window_bounds = array<i64: 1, 16, 128>}, {pipeline_mode = #tpu.pipeline_mode<synchronous>, transform_indices = @transform_1, window_bounds = array<i64: 7, 128, 256>}, {pipeline_mode = #tpu.pipeline_mode<synchronous>, transform_indices = @transform_2, window_bounds = array<i64: 1, 256>}, {transform_indices = @transform_3, window_bounds = array<i64: 1, 16, 256>}]} {
    %cst = arith.constant 0.000000e+00 : bf16
    %0 = vector.broadcast %cst : bf16 to vector<22x128xbf16>
    %c0 = arith.constant 0 : index
    %c0_0 = arith.constant 0 : index
    %1 = vector.load %arg5[%c0, %c0_0] : memref<22x128xbf16, #tpu.memory_space<vmem>>, vector<22x128xbf16>
    tpu.vector_store %arg5[%c0, %c0_0], %0 {strides = array<i32>} : memref<22x128xbf16, #tpu.memory_space<vmem>>, vector<22x128xbf16>,
    %c0_1 = arith.constant 0 : index
    %c0_2 = arith.constant 0 : index
    %c0_3 = arith.constant 0 : index
    %2 = vector.load %arg1[%c0_1, %c0_2, %c0_3] : memref<1x16x128xf32, #tpu.memory_space<vmem>>, vector<1x16x128xf32>
    %3 = vector.shape_cast %2 : vector<1x16x128xf32> to vector<16x128xf32>
    %4 = arith.truncf %3 : vector<16x128xf32> to vector<16x128xbf16>
    %c3 = arith.constant 3 : index
    %c0_4 = arith.constant 0 : index
    %5 = vector.load %arg5[%c3, %c0_4] : memref<22x128xbf16, #tpu.memory_space<vmem>>, vector<16x128xbf16>
    tpu.vector_store %arg5[%c3, %c0_4], %4 {strides = array<i32>} : memref<22x128xbf16, #tpu.memory_space<vmem>>, vector<16x128xbf16>,
    %cst_5 = arith.constant 0.000000e+00 : f32
    %6 = vector.broadcast %cst_5 : f32 to vector<16x256xf32>
    %c0_6 = arith.constant 0 : index
    %c0_7 = arith.constant 0 : index
    %7 = vector.load %arg5[%c0_6, %c0_7] : memref<22x128xbf16, #tpu.memory_space<vmem>>, vector<16x128xbf16>
    %c0_8 = arith.constant 0 : index
    %c0_9 = arith.constant 0 : index
    %c0_10 = arith.constant 0 : index
    %8 = vector.load %arg2[%c0_8, %c0_9, %c0_10] : memref<7x128x256xbf16, #tpu.memory_space<vmem>>, vector<1x128x256xbf16>
    %9 = vector.shape_cast %8 : vector<1x128x256xbf16> to vector<128x256xbf16>
    %cst_11 = arith.constant dense<0.000000e+00> : vector<16x256xf32>
    %10 = tpu.matmul %7, %9, %cst_11 {dimension_numbers = #tpu.dot_dimension_numbers<[1], [0], [0], [1], [0, 0, 1, 1], [], []>} : vector<16x128xbf16>, vector<128x256xbf16>, vector<16x256xf32> -> vector<16x256xf32>
    %11 = arith.addf %6, %10 : vector<16x256xf32>
    %c1 = arith.constant 1 : index
    %c0_12 = arith.constant 0 : index
    %12 = vector.load %arg5[%c1, %c0_12] : memref<22x128xbf16, #tpu.memory_space<vmem>>, vector<16x128xbf16>
    %c1_13 = arith.constant 1 : index
    %c0_14 = arith.constant 0 : index
    %c0_15 = arith.constant 0 : index
    %13 = vector.load %arg2[%c1_13, %c0_14, %c0_15] : memref<7x128x256xbf16, #tpu.memory_space<vmem>>, vector<1x128x256xbf16>
    %14 = vector.shape_cast %13 : vector<1x128x256xbf16> to vector<128x256xbf16>
    %cst_16 = arith.constant dense<0.000000e+00> : vector<16x256xf32>
    %15 = tpu.matmul %12, %14, %cst_16 {dimension_numbers = #tpu.dot_dimension_numbers<[1], [0], [0], [1], [0, 0, 1, 1], [], []>} : vector<16x128xbf16>, vector<128x256xbf16>, vector<16x256xf32> -> vector<16x256xf32>
    %16 = arith.addf %11, %15 : vector<16x256xf32>
    %c2 = arith.constant 2 : index
    %c0_17 = arith.constant 0 : index
    %17 = vector.load %arg5[%c2, %c0_17] : memref<22x128xbf16, #tpu.memory_space<vmem>>, vector<16x128xbf16>
    %c2_18 = arith.constant 2 : index
    %c0_19 = arith.constant 0 : index
    %c0_20 = arith.constant 0 : index
    %18 = vector.load %arg2[%c2_18, %c0_19, %c0_20] : memref<7x128x256xbf16, #tpu.memory_space<vmem>>, vector<1x128x256xbf16>
    %19 = vector.shape_cast %18 : vector<1x128x256xbf16> to vector<128x256xbf16>
    %cst_21 = arith.constant dense<0.000000e+00> : vector<16x256xf32>
    %20 = tpu.matmul %17, %19, %cst_21 {dimension_numbers = #tpu.dot_dimension_numbers<[1], [0], [0], [1], [0, 0, 1, 1], [], []>} : vector<16x128xbf16>, vector<128x256xbf16>, vector<16x256xf32> -> vector<16x256xf32>
    %21 = arith.addf %16, %20 : vector<16x256xf32>
    %c3_22 = arith.constant 3 : index
    %c0_23 = arith.constant 0 : index
    %22 = vector.load %arg5[%c3_22, %c0_23] : memref<22x128xbf16, #tpu.memory_space<vmem>>, vector<16x128xbf16>
    %c3_24 = arith.constant 3 : index
    %c0_25 = arith.constant 0 : index
    %c0_26 = arith.constant 0 : index
    %23 = vector.load %arg2[%c3_24, %c0_25, %c0_26] : memref<7x128x256xbf16, #tpu.memory_space<vmem>>, vector<1x128x256xbf16>
    %24 = vector.shape_cast %23 : vector<1x128x256xbf16> to vector<128x256xbf16>
    %cst_27 = arith.constant dense<0.000000e+00> : vector<16x256xf32>
    %25 = tpu.matmul %22, %24, %cst_27 {dimension_numbers = #tpu.dot_dimension_numbers<[1], [0], [0], [1], [0, 0, 1, 1], [], []>} : vector<16x128xbf16>, vector<128x256xbf16>, vector<16x256xf32> -> vector<16x256xf32>
    %26 = arith.addf %21, %25 : vector<16x256xf32>
    %c4 = arith.constant 4 : index
    %c0_28 = arith.constant 0 : index
    %27 = vector.load %arg5[%c4, %c0_28] : memref<22x128xbf16, #tpu.memory_space<vmem>>, vector<16x128xbf16>
    %c4_29 = arith.constant 4 : index
    %c0_30 = arith.constant 0 : index
    %c0_31 = arith.constant 0 : index
    %28 = vector.load %arg2[%c4_29, %c0_30, %c0_31] : memref<7x128x256xbf16, #tpu.memory_space<vmem>>, vector<1x128x256xbf16>
    %29 = vector.shape_cast %28 : vector<1x128x256xbf16> to vector<128x256xbf16>
    %cst_32 = arith.constant dense<0.000000e+00> : vector<16x256xf32>
    %30 = tpu.matmul %27, %29, %cst_32 {dimension_numbers = #tpu.dot_dimension_numbers<[1], [0], [0], [1], [0, 0, 1, 1], [], []>} : vector<16x128xbf16>, vector<128x256xbf16>, vector<16x256xf32> -> vector<16x256xf32>
    %31 = arith.addf %26, %30 : vector<16x256xf32>
    %c5 = arith.constant 5 : index
    %c0_33 = arith.constant 0 : index
    %32 = vector.load %arg5[%c5, %c0_33] : memref<22x128xbf16, #tpu.memory_space<vmem>>, vector<16x128xbf16>
    %c5_34 = arith.constant 5 : index
    %c0_35 = arith.constant 0 : index
    %c0_36 = arith.constant 0 : index
    %33 = vector.load %arg2[%c5_34, %c0_35, %c0_36] : memref<7x128x256xbf16, #tpu.memory_space<vmem>>, vector<1x128x256xbf16>
    %34 = vector.shape_cast %33 : vector<1x128x256xbf16> to vector<128x256xbf16>
    %cst_37 = arith.constant dense<0.000000e+00> : vector<16x256xf32>
    %35 = tpu.matmul %32, %34, %cst_37 {dimension_numbers = #tpu.dot_dimension_numbers<[1], [0], [0], [1], [0, 0, 1, 1], [], []>} : vector<16x128xbf16>, vector<128x256xbf16>, vector<16x256xf32> -> vector<16x256xf32>
    %36 = arith.addf %31, %35 : vector<16x256xf32>
    %c6 = arith.constant 6 : index
    %c0_38 = arith.constant 0 : index
    %37 = vector.load %arg5[%c6, %c0_38] : memref<22x128xbf16, #tpu.memory_space<vmem>>, vector<16x128xbf16>
    %c6_39 = arith.constant 6 : index
    %c0_40 = arith.constant 0 : index
    %c0_41 = arith.constant 0 : index
    %38 = vector.load %arg2[%c6_39, %c0_40, %c0_41] : memref<7x128x256xbf16, #tpu.memory_space<vmem>>, vector<1x128x256xbf16>
    %39 = vector.shape_cast %38 : vector<1x128x256xbf16> to vector<128x256xbf16>
    %cst_42 = arith.constant dense<0.000000e+00> : vector<16x256xf32>
    %40 = tpu.matmul %37, %39, %cst_42 {dimension_numbers = #tpu.dot_dimension_numbers<[1], [0], [0], [1], [0, 0, 1, 1], [], []>} : vector<16x128xbf16>, vector<128x256xbf16>, vector<16x256xf32> -> vector<16x256xf32>
    %41 = arith.addf %36, %40 : vector<16x256xf32>
    %c0_43 = arith.constant 0 : index
    %c0_44 = arith.constant 0 : index
    %42 = vector.load %arg3[%c0_43, %c0_44] : memref<1x256xf32, #tpu.memory_space<vmem>>, vector<1x256xf32>
    %43 = vector.broadcast %42 : vector<1x256xf32> to vector<16x256xf32>
    %44 = arith.addf %41, %43 : vector<16x256xf32>
    %cst_45 = arith.constant 0.000000e+00 : f32
    %45 = vector.broadcast %cst_45 : f32 to vector<16x256xf32>
    %46 = arith.maximumf %44, %45 : vector<16x256xf32>
    %c0_46 = arith.constant 0 : index
    %c0_47 = arith.constant 0 : index
    %c0_48 = arith.constant 0 : index
    %47 = vector.load %arg4[%c0_46, %c0_47, %c0_48] : memref<1x16x256xf32, #tpu.memory_space<vmem>>, vector<1x16x256xf32>
    %48 = vector.shape_cast %47 : vector<1x16x256xf32> to vector<16x256xf32>
    %49 = vector.shape_cast %46 : vector<16x256xf32> to vector<1x16x256xf32>
    tpu.vector_store %arg4[%c0_46, %c0_47, %c0_48], %49 {strides = array<i32>} : memref<1x16x256xf32, #tpu.memory_space<vmem>>, vector<1x16x256xf32>,
    return
  }
  func.func @transform_0(%arg0: i32) -> (i32, i32, i32) {
    %c0_i32 = arith.constant 0 : i32
    %c0_i32_0 = arith.constant 0 : i32
    %c0_i32_1 = arith.constant 0 : i32
    return %arg0, %c0_i32, %c0_i32_0 : i32, i32, i32
  }
  func.func @transform_1(%arg0: i32) -> (i32, i32, i32) {
    %c0_i32 = arith.constant 0 : i32
    %c0_i32_0 = arith.constant 0 : i32
    %c0_i32_1 = arith.constant 0 : i32
    %c0_i32_2 = arith.constant 0 : i32
    return %c0_i32, %c0_i32_0, %c0_i32_1 : i32, i32, i32
  }
  func.func @transform_2(%arg0: i32) -> (i32, i32) {
    %c0_i32 = arith.constant 0 : i32
    %c0_i32_0 = arith.constant 0 : i32
    %c0_i32_1 = arith.constant 0 : i32
    return %c0_i32, %c0_i32_0 : i32, i32
  }
  func.func @transform_3(%arg0: i32) -> (i32, i32, i32) {
    %c0_i32 = arith.constant 0 : i32
    %c0_i32_0 = arith.constant 0 : i32
    %c0_i32_1 = arith.constant 0 : i32
    return %arg0, %c0_i32, %c0_i32_0 : i32, i32, i32
  }
}

</mosaic_0001>

<llo_original>
// kernel: tile.6
$region0: #{tile.6}
  #allocation0 [shape = 's32[1]{0}', space=sflag, size = 0x4, scoped, tag = 'scoped memory for tile.6']
  %s0 = inlined_call_operand.vmem [shape: f32[16], index: 0, kind: input, shape index: {}]
  %s1 = inlined_call_operand.vmem [shape: f32[16,16], index: 1, kind: output, shape index: {}]
  // Predicated region
  $region2: #{tile.6} parent=0 // pred_check
    _
  $region3: #{tile.6} parent=0 // pred_check_branch
    %3 = sbr.rel (0) target = $region5
  $region4: #{tile.6} parent=0 // pred_region
    _
  $region5: #{tile.6} parent=0 // pred_fallthru
    _
  %v4 = vld [vmem:[%s0] ss:$0 sm:$0xff]
  %5 = vst [vmem:[%s1] sm:$0xff] %v4
  %s6 = scalar_lea.vmem %s1, 8
  %7 = vst [vmem:[%s6] sm:$0xff] %v4

// kernel: tile.7
$region0: #{tile.7}
  %s0 = inlined_call_operand.vmem [shape: f32[16,16], index: 0, kind: input, shape index: {}]
  %s1 = inlined_call_operand.vmem [shape: f32[1,256], index: 1, kind: output, shape index: {}]
  $region1: #{tile.7} parent=0
    #allocation0 [shape = 'u8[8192]{0}', space=vmem, size = 0x2000, scoped, tag = 'scoped mem for output reshape']
    %s2 = smov 3
    %v3 = vld [vmem:[%s0] ss:$8 sm:%s2]
    %vm4 = vcmask 130048
    %5 = vst.msk [vmem:[#allocation0] ss:$8 sm:$0x3] %vm4, %v3
    %s6 = scalar_lea.vmem %s0, 7
    %s7 = smov 3
    %v8 = vld [vmem:[%s6] ss:$8 sm:%s7]
    %9 = vrot.lane.b32.xlu0 %v8, 112
    %v10 = vpop.permute.xlu0 %9
    %vm11 = vcmask 1048448
    %12 = vst.msk [vmem:[#allocation0] ss:$8 sm:$0x3] %vm11, %v10
    %s13 = scalar_lea.vmem %s0, 6
    %s14 = smov 3
    %v15 = vld [vmem:[%s13] ss:$8 sm:%s14]
    %16 = vrot.lane.b32.xlu0 %v15, 96
    %v17 = vpop.permute.xlu0 %16
    %vm18 = vcmask 917248
    %19 = vst.msk [vmem:[#allocation0] ss:$8 sm:$0x3] %vm18, %v17
    %s20 = scalar_lea.vmem %s0, 5
    %s21 = smov 3
    %v22 = vld [vmem:[%s20] ss:$8 sm:%s21]
    %23 = vrot.lane.b32.xlu0 %v22, 80
    %v24 = vpop.permute.xlu0 %23
    %vm25 = vcmask 786048
    %26 = vst.msk [vmem:[#allocation0] ss:$8 sm:$0x3] %vm25, %v24
    %s27 = scalar_lea.vmem %s0, 4
    %s28 = smov 3
    %v29 = vld [vmem:[%s27] ss:$8 sm:%s28]
    %30 = vrot.lane.b32.xlu0 %v29, 64
    %v31 = vpop.permute.xlu0 %30
    %vm32 = vcmask 654848
    %33 = vst.msk [vmem:[#allocation0] ss:$8 sm:$0x3] %vm32, %v31
    %s34 = scalar_lea.vmem %s0, 3
    %s35 = smov 3
    %v36 = vld [vmem:[%s34] ss:$8 sm:%s35]
    %37 = vrot.lane.b32.xlu0 %v36, 48
    %v38 = vpop.permute.xlu0 %37
    %vm39 = vcmask 523648
    %40 = vst.msk [vmem:[#allocation0] ss:$8 sm:$0x3] %vm39, %v38
    %s41 = scalar_lea.vmem %s0, 2
    %s42 = smov 3
    %v43 = vld [vmem:[%s41] ss:$8 sm:%s42]
    %44 = vrot.lane.b32.xlu0 %v43, 32
    %v45 = vpop.permute.xlu0 %44
    %vm46 = vcmask 392448
    %47 = vst.msk [vmem:[#allocation0] ss:$8 sm:$0x3] %vm46, %v45
    %s48 = scalar_lea.vmem %s0, 1
    %s49 = smov 3
    %v50 = vld [vmem:[%s48] ss:$8 sm:%s49]
    %51 = vrot.lane.b32.xlu0 %v50, 16
    %v52 = vpop.permute.xlu0 %51
    %vm53 = vcmask 261248
    %54 = vst.msk [vmem:[#allocation0] ss:$8 sm:$0x3] %vm53, %v52
    %s56 = ssub.s32 2, 1
    %v57 = vld [vmem:[#allocation0] sm:%s56]
    %s59 = ssub.s32 2, 1
    %60 = vst [vmem:[%s1] sm:%s59] %v57
    %s61 = scalar_lea.vmem [#allocation0], 8
    %v62 = vld [vmem:[%s61] sm:%s56]
    %s64 = ssub.s32 2, 1
    %s65 = scalar_lea.vmem %s1, 1
    %66 = vst [vmem:[%s65] sm:%s64] %v62

// kernel: sa_module_head_forward.1
$region0: #{sa_module_head_forward.1}
  #allocation0 [shape = 'u32[]', space=smem, size = 0x4, offset = 0x4, fixed_abs, tag = 'smem constant byte address 0x4 - core index']
  #allocation1 [shape = 'u32[72,128]{1,0:T(1,128)}', space=vmem, size = 0x9000, scoped, tag = 'internal scratch']
  #allocation2 [shape = 'bf16[22,128]{1,0:T(8,128)(2,1)}', space=vmem, size = 0x1800, scoped, tag = 'scratch operand']
  %s0 = inlined_call_operand.vmem [shape: f32[2,16,128], index: 0, kind: input, shape index: {}]
  %s1 = inlined_call_operand.vmem [shape: bf16[7,128,256], index: 1, kind: input, shape index: {}]
  %s2 = inlined_call_operand.vmem [shape: f32[1,256], index: 2, kind: input, shape index: {}]
  %s3 = inlined_call_operand.vmem [shape: f32[2,16,256], index: 3, kind: output, shape index: {}]
  %s4 = sld [smem:[#allocation0]]
  $region45: #{sa_module_head_forward.1} parent=0
    _
  %s6 = ssub.s32 1, %s4
  %s7 = scalar_select 0, %s6, %s4
  loop: start=0, step=1, limit=4
  $region2: #{sa_module_head_forward.1} parent=0 // loop_pre_header
    _
  $region3: #{sa_module_head_forward.1} parent=0 // loop_header
    %s9 = sphi 0, %s13
    %p10 = scmp.ge.s32.totalorder %s9, 4
    %s19 = sphi 0, %s21
    %s22 = sphi 0, %s19
    %s23 = sphi 0, %s22
    %s39 = sphi 0, %s23
    %s43 = sphi 0, %s43
    %s45 = sphi 0, %s43
    %s46 = sphi 0, %s45
    %s60 = sphi 0, %s46
    %s64 = sphi 0, %s64
    %s66 = sphi 0, %s64
    %s67 = sphi 0, %s66
    %s81 = sphi 0, %s67
    %s87 = sphi 0, %s89
    %s90 = sphi 0, %s87
    %s91 = sphi 0, %s90
    %s107 = sphi 0, %s91
  $region4: #{sa_module_head_forward.1} parent=0 // loop_header_branch
    %12 = sbr.rel (%p10) target = $region8
  $region5: #{sa_module_head_forward.1} parent=0 // loop_body
    %s14 = ssub.s32 %s9, 1
    %s15 = ssub.s32 %s9, 2
    %s16 = sadd.s32 %s9, 1
    %s17 = ssub.s32 %s9, %s16
    %p18 = scmp.eq.s32.totalorder %s17, 0
    %s20 = sadd.s32 %s19, 1
    %s21 = scalar_select %p18, %s19, %s20
    %p24 = pneg %p18
    %p25 = scmp.eq.s32.totalorder %s9, 1
    %p26 = por %p24, %p25
    %p27 = scmp.ne.s32.totalorder %s19, %s22
    %p28 = scmp.eq.s32.totalorder %s9, 0
    %p29 = por %p27, %p28
    %p30 = scmp.ne.s32.totalorder %s19, %s22
    %p31 = scmp.eq.s32.totalorder %s14, 1
    %p32 = por %p30, %p31
    %p33 = scmp.ne.s32.totalorder %s22, %s23
    %p34 = scmp.eq.s32.totalorder %s14, 0
    %p35 = por %p33, %p34
    %p36 = scmp.ne.s32.totalorder %s22, %s23
    %p37 = scmp.eq.s32.totalorder %s15, 1
    %p38 = por %p36, %p37
    %p40 = scmp.ne.s32.totalorder %s23, %s39
    %p41 = scmp.eq.s32.totalorder %s15, 0
    %p42 = por %p40, %p41
    %s44 = sadd.s32 %s43, 1
    %p47 = scmp.eq.s32.totalorder %s9, 1
    %p48 = scmp.ne.s32.totalorder %s43, %s45
    %p49 = scmp.eq.s32.totalorder %s9, 0
    %p50 = por %p48, %p49
    %p51 = scmp.ne.s32.totalorder %s43, %s45
    %p52 = scmp.eq.s32.totalorder %s14, 1
    %p53 = por %p51, %p52
    %p54 = scmp.ne.s32.totalorder %s45, %s46
    %p55 = scmp.eq.s32.totalorder %s14, 0
    %p56 = por %p54, %p55
    %p57 = scmp.ne.s32.totalorder %s45, %s46
    %p58 = scmp.eq.s32.totalorder %s15, 1
    %p59 = por %p57, %p58
    %p61 = scmp.ne.s32.totalorder %s46, %s60
    %p62 = scmp.eq.s32.totalorder %s15, 0
    %p63 = por %p61, %p62
    %s65 = sadd.s32 %s64, 1
    %p68 = scmp.eq.s32.totalorder %s9, 1
    %p69 = scmp.ne.s32.totalorder %s64, %s66
    %p70 = scmp.eq.s32.totalorder %s9, 0
    %p71 = por %p69, %p70
    %p72 = scmp.ne.s32.totalorder %s64, %s66
    %p73 = scmp.eq.s32.totalorder %s14, 1
    %p74 = por %p72, %p73
    %p75 = scmp.ne.s32.totalorder %s66, %s67
    %p76 = scmp.eq.s32.totalorder %s14, 0
    %p77 = por %p75, %p76
    %p78 = scmp.ne.s32.totalorder %s66, %s67
    %p79 = scmp.eq.s32.totalorder %s15, 1
    %p80 = por %p78, %p79
    %p82 = scmp.ne.s32.totalorder %s67, %s81
    %p83 = scmp.eq.s32.totalorder %s15, 0
    %p84 = por %p82, %p83
    %s85 = ssub.s32 %s9, %s16
    %p86 = scmp.eq.s32.totalorder %s85, 0
    %s88 = sadd.s32 %s87, 1
    %s89 = scalar_select %p86, %s87, %s88
    %p92 = pneg %p86
    %p93 = scmp.eq.s32.totalorder %s9, 1
    %p94 = por %p92, %p93
    %p95 = scmp.ne.s32.totalorder %s87, %s90
    %p96 = scmp.eq.s32.totalorder %s9, 0
    %p97 = por %p95, %p96
    %p98 = scmp.ne.s32.totalorder %s87, %s90
    %p99 = scmp.eq.s32.totalorder %s14, 1
    %p100 = por %p98, %p99
    %p101 = scmp.ne.s32.totalorder %s90, %s91
    %p102 = scmp.eq.s32.totalorder %s14, 0
    %p103 = por %p101, %p102
    %p104 = scmp.ne.s32.totalorder %s90, %s91
    %p105 = scmp.eq.s32.totalorder %s15, 1
    %p106 = por %p104, %p105
    %p108 = scmp.ne.s32.totalorder %s91, %s107
    %p109 = scmp.eq.s32.totalorder %s15, 0
    %p110 = por %p108, %p109
    %p111 = scmp.le.s32.totalorder 1, %s9
    %p112 = scmp.lt.s32.totalorder %s9, 3
    %p113 = pnand %p111, %p112
    %p114 = pneg %p113
    // Predicated region
    $region9: #{sa_module_head_forward.1} parent=5 // pred_check
      _
    $region10: #{sa_module_head_forward.1} parent=5 // pred_check_branch
      %116 = sbr.rel (%p113) target = $region12
    $region11: #{sa_module_head_forward.1} parent=5 // pred_region
      %s117 = ssub.s32 %s9, 1
      // Predicated region
      $region13: #{sa_module_head_forward.1} parent=11 // pred_check
        %p118 = pneg %p56
      $region14: #{sa_module_head_forward.1} parent=11 // pred_check_branch
        %120 = sbr.rel (%p118) target = $region16
      $region15: #{sa_module_head_forward.1} parent=11 // pred_region
        _
      $region16: #{sa_module_head_forward.1} parent=11 // pred_fallthru
        _
      // Predicated region
      $region17: #{sa_module_head_forward.1} parent=11 // pred_check
        %p121 = pneg %p77
      $region18: #{sa_module_head_forward.1} parent=11 // pred_check_branch
        %123 = sbr.rel (%p121) target = $region20
      $region19: #{sa_module_head_forward.1} parent=11 // pred_region
        _
      $region20: #{sa_module_head_forward.1} parent=11 // pred_fallthru
        _
    $region12: #{sa_module_head_forward.1} parent=5 // pred_fallthru
      _
    %p124 = scmp.lt.s32.totalorder %s9, 2
    // Predicated region
    $region21: #{sa_module_head_forward.1} parent=5 // pred_check
      %p125 = pneg %p124
    $region22: #{sa_module_head_forward.1} parent=5 // pred_check_branch
      %127 = sbr.rel (%p125) target = $region24
    $region23: #{sa_module_head_forward.1} parent=5 // pred_region
      // Predicated region
      $region25: #{sa_module_head_forward.1} parent=23 // pred_check
        %p128 = pneg %p29
      $region26: #{sa_module_head_forward.1} parent=23 // pred_check_branch
        %130 = sbr.rel (%p128) target = $region28
      $region27: #{sa_module_head_forward.1} parent=23 // pred_region
        %p131 = scmp.lt.s32.totalorder %s9, 1
        %s132 = scalar_select %p131, %s9, 1
        %s133 = smul.addr %s132, 2
        %s134 = smul.addr %s133, 8
        %s135 = scalar_lea.vmem %s0, %s134
      $region28: #{sa_module_head_forward.1} parent=23 // pred_fallthru
        _
    $region24: #{sa_module_head_forward.1} parent=5 // pred_fallthru
      _
    %p136 = scmp.le.s32.totalorder 1, %s9
    %p137 = scmp.lt.s32.totalorder %s9, 3
    %p138 = pnand %p136, %p137
    %p139 = pneg %p138
    // Predicated region
    $region29: #{sa_module_head_forward.1} parent=5 // pred_check
      _
    $region30: #{sa_module_head_forward.1} parent=5 // pred_check_branch
      %141 = sbr.rel (%p138) target = $region32
    $region31: #{sa_module_head_forward.1} parent=5 // pred_region
      %s142 = ssub.s32 %s9, 1
      %p143 = scmp.lt.s32.totalorder %s14, 1
      %s144 = scalar_select %p143, %s14, 1
      %s145 = smul.addr %s144, 2
      %s146 = smul.addr %s145, 8
      %s147 = scalar_lea.vmem %s0, %s146
      %p148 = pneg %p35
      %p149 = pneg %p32
      %p150 = pneg %p56
      %p151 = pneg %p53
      %p152 = pneg %p77
      %p153 = pneg %p74
      %p154 = pneg %p103
      %p155 = pneg %p100
      %p156 = scmp.lt.s32.totalorder %s14, 1
      %s157 = scalar_select %p156, %s14, 1
      %s158 = smul.addr %s157, 4
      %s159 = smul.addr %s158, 8
      %s160 = scalar_lea.vmem %s3, %s159
      %p161 = scmp.lt.s32.totalorder %s14, 1
      %s162 = scalar_select %p161, %s14, 1
      %s163 = smul.addr %s162, 2
      %s164 = smul.addr %s163, 8
      %s165 = scalar_lea.vmem %s0, %s164
      %p166 = scmp.lt.s32.totalorder %s14, 1
      %s167 = scalar_select %p166, %s14, 1
      %s168 = smul.addr %s167, 4
      %s169 = smul.addr %s168, 8
      %s170 = scalar_lea.vmem %s3, %s169
      %172 = vst [vmem:[#allocation2] sm:$0xf] 0
      %173 = vst [vmem:[#allocation2 + $0x4] sm:$0xf] 0
      %174 = vst [vmem:[#allocation2 + $0x8] sm:$0x7] 0
      %v175 = vld [vmem:[%s165] sm:$0xff]
      %v176 = vld [vmem:[%s165 + $0x8] sm:$0xff]
      %v177 = vpack.c.bf16 %v175, %v175
      %v178 = vpack.c.bf16 %v176, %v176
      %vm179 = vsmask.f32 1280
      %vm180 = vsmask.f32 5392
      %vm181 = vmor %vm179, %vm180
      %v183 = vshrl.u32 %v177, 16
      %v185 = vrot.slane %v183, 6
      %v186 = vshll.u32 %v177, 16
      %v188 = vrot.slane %v186, 7
      %v189 = vor.u32 %v185, %v188
      %v190 = vrot.slane %v189, 4
      %v192 = vshrl.u32 %v178, 16
      %v194 = vrot.slane %v192, 6
      %v195 = vshll.u32 %v178, 16
      %v197 = vrot.slane %v195, 7
      %v198 = vor.u32 %v194, %v197
      %v199 = vsel %vm181, %v190, %v198
      %v200 = vrot.slane %v198, 4
      %vm204 = vcmask 1043457
      %vm205 = vsmask.f32 7942
      %vm206 = vmand %vm204, %vm205
      %v207 = vld [vmem:[#allocation2] sm:$0xe]
      %v208 = vsel %vm206, %v189, %v207
      %209 = vst [vmem:[#allocation2] sm:$0xe] %v208
      %210 = vst [vmem:[#allocation2 + $0x4] sm:$0xf] %v199
      %vm211 = vcmask 1041408
      %vm212 = vmand %vm211, %vm179
      %v213 = vld [vmem:[#allocation2 + $0x8] sm:$0x3]
      %v214 = vsel %vm212, %v200, %v213
      %215 = vst [vmem:[#allocation2 + $0x8] sm:$0x3] %v214
      %v216 = vld [vmem:[#allocation2] sm:$0xf]
      %v217 = vld [vmem:[#allocation2 + $0x4] sm:$0xf]
      %v218 = vld [vmem:[%s1] sm:$0xff]
      %v219 = vld [vmem:[%s1 + $0x8] sm:$0xff]
      %v220 = vld [vmem:[%s1 + $0x10] sm:$0xff]
      %v221 = vld [vmem:[%s1 + $0x18] sm:$0xff]
      %v222 = vld [vmem:[%s1 + $0x20] sm:$0xff]
      %v223 = vld [vmem:[%s1 + $0x28] sm:$0xff]
      %v224 = vld [vmem:[%s1 + $0x30] sm:$0xff]
      %v225 = vld [vmem:[%s1 + $0x38] sm:$0xff]
      %v226 = vld [vmem:[%s1 + $0x40] sm:$0xff]
      %v227 = vld [vmem:[%s1 + $0x48] sm:$0xff]
      %v228 = vld [vmem:[%s1 + $0x50] sm:$0xff]
      %v229 = vld [vmem:[%s1 + $0x58] sm:$0xff]
      %v230 = vld [vmem:[%s1 + $0x60] sm:$0xff]
      %v231 = vld [vmem:[%s1 + $0x68] sm:$0xff]
      %v232 = vld [vmem:[%s1 + $0x70] sm:$0xff]
      %v233 = vld [vmem:[%s1 + $0x78] sm:$0xff]
      %v234 = vld [vmem:[#allocation2 + $0x8] sm:$0x1]
      %s235 = scalar_lea.vmem %s1, 128
      %v236 = vld [vmem:[%s235] sm:$0xff]
      %v237 = vld [vmem:[%s235 + $0x8] sm:$0xff]
      %v238 = vld [vmem:[%s235 + $0x10] sm:$0xff]
      %v239 = vld [vmem:[%s235 + $0x18] sm:$0xff]
      %v240 = vld [vmem:[%s235 + $0x20] sm:$0xff]
      %v241 = vld [vmem:[%s235 + $0x28] sm:$0xff]
      %v242 = vld [vmem:[%s235 + $0x30] sm:$0xff]
      %v243 = vld [vmem:[%s235 + $0x38] sm:$0xff]
      %v244 = vld [vmem:[%s235 + $0x40] sm:$0xff]
      %v245 = vld [vmem:[%s235 + $0x48] sm:$0xff]
      %v246 = vld [vmem:[%s235 + $0x50] sm:$0xff]
      %v247 = vld [vmem:[%s235 + $0x58] sm:$0xff]
      %v248 = vld [vmem:[%s235 + $0x60] sm:$0xff]
      %v249 = vld [vmem:[%s235 + $0x68] sm:$0xff]
      %v250 = vld [vmem:[%s235 + $0x70] sm:$0xff]
      %v251 = vld [vmem:[%s235 + $0x78] sm:$0xff]
      %v255 = vunpack.c.l.b16 %v216
      %v256 = vunpack.c.l.b16 %v217
      %v257 = vunpack.c.l.b16 %v234
      %v258 = vpack.c.b16 %v256, %v255
      %v259 = vpack.c.b16 %v257, %v257
      %vm260 = vsmask.f32 7424
      %v262 = vshrl.u32 %v258, 16
      %v264 = vshll.u32 %v258, 16
      %v266 = vrot.slane %v264, 1
      %v267 = vor.u32 %v262, %v266
      %v269 = vshll.u32 %v259, 16
      %v271 = vrot.slane %v269, 1
      %v272 = vsel %vm260, %v267, %v271
      %v290 = vunpack.c.l.b16 %v236
      %v291 = vunpack.c.h.b16 %v236
      %v292 = vunpack.c.l.b16 %v237
      %v293 = vunpack.c.h.b16 %v237
      %v294 = vunpack.c.l.b16 %v238
      %v295 = vunpack.c.h.b16 %v238
      %v296 = vunpack.c.l.b16 %v239
      %v297 = vunpack.c.h.b16 %v239
      %v298 = vunpack.c.l.b16 %v240
      %v299 = vunpack.c.h.b16 %v240
      %v300 = vunpack.c.l.b16 %v241
      %v301 = vunpack.c.h.b16 %v241
      %v302 = vunpack.c.l.b16 %v242
      %v303 = vunpack.c.h.b16 %v242
      %v304 = vunpack.c.l.b16 %v243
      %v305 = vunpack.c.h.b16 %v243
      %v306 = vunpack.c.l.b16 %v244
      %v307 = vunpack.c.h.b16 %v244
      %v308 = vunpack.c.l.b16 %v245
      %v309 = vunpack.c.h.b16 %v245
      %v310 = vunpack.c.l.b16 %v246
      %v311 = vunpack.c.h.b16 %v246
      %v312 = vunpack.c.l.b16 %v247
      %v313 = vunpack.c.h.b16 %v247
      %v314 = vunpack.c.l.b16 %v248
      %v315 = vunpack.c.h.b16 %v248
      %v316 = vunpack.c.l.b16 %v249
      %v317 = vunpack.c.h.b16 %v249
      %v318 = vunpack.c.l.b16 %v250
      %v319 = vunpack.c.h.b16 %v250
      %v320 = vunpack.c.l.b16 %v251
      %v321 = vunpack.c.h.b16 %v251
      %v322 = vpack.c.b16 %v292, %v290
      %v323 = vpack.c.b16 %v293, %v291
      %v324 = vpack.c.b16 %v296, %v294
      %v325 = vpack.c.b16 %v297, %v295
      %v326 = vpack.c.b16 %v300, %v298
      %v327 = vpack.c.b16 %v301, %v299
      %v328 = vpack.c.b16 %v304, %v302
      %v329 = vpack.c.b16 %v305, %v303
      %v330 = vpack.c.b16 %v308, %v306
      %v331 = vpack.c.b16 %v309, %v307
      %v332 = vpack.c.b16 %v312, %v310
      %v333 = vpack.c.b16 %v313, %v311
      %v334 = vpack.c.b16 %v316, %v314
      %v335 = vpack.c.b16 %v317, %v315
      %v336 = vpack.c.b16 %v320, %v318
      %v337 = vpack.c.b16 %v321, %v319
      %354 = vmatpush.bf16.msra.mxu0 %v336
      %355 = vmatpush.bf16.msra.mxu0 %v334
      %356 = vmatpush.bf16.msra.mxu0 %v332
      %357 = vmatpush.bf16.msra.mxu0 %v330
      %358 = vmatpush.bf16.msra.mxu0 %v328
      %359 = vmatpush.bf16.msra.mxu0 %v326
      %360 = vmatpush.bf16.msra.mxu0 %v324
      %361 = vmatpush.bf16.msra.mxu0 %v322
      %362 = vmatmul.bf16.gmra.mxu0 %v272
      %v363 = vpop.f32.mrf.mxu0
      %v364 = vadd.f32 0.0, %v363
      %v365 = vpop.f32.mrf.mxu0
      %v366 = vadd.f32 0.0, %v365
      %367 = vdwg.mxu0
      %368 = vmatpush.bf16.msra.mxu0 %v337
      %369 = vmatpush.bf16.msra.mxu0 %v335
      %370 = vmatpush.bf16.msra.mxu0 %v333
      %371 = vmatpush.bf16.msra.mxu0 %v331
      %372 = vmatpush.bf16.msra.mxu0 %v329
      %373 = vmatpush.bf16.msra.mxu0 %v327
      %374 = vmatpush.bf16.msra.mxu0 %v325
      %375 = vmatpush.bf16.msra.mxu0 %v323
      %376 = vmatmul.bf16.gmra.mxu0 %v272
      %v377 = vpop.f32.mrf.mxu0
      %v378 = vadd.f32 0.0, %v377
      %v379 = vpop.f32.mrf.mxu0
      %v380 = vadd.f32 0.0, %v379
      %381 = vdwg.mxu0
      %v399 = vunpack.c.l.b16 %v218
      %v400 = vunpack.c.h.b16 %v218
      %v401 = vunpack.c.l.b16 %v219
      %v402 = vunpack.c.h.b16 %v219
      %v403 = vunpack.c.l.b16 %v220
      %v404 = vunpack.c.h.b16 %v220
      %v405 = vunpack.c.l.b16 %v221
      %v406 = vunpack.c.h.b16 %v221
      %v407 = vunpack.c.l.b16 %v222
      %v408 = vunpack.c.h.b16 %v222
      %v409 = vunpack.c.l.b16 %v223
      %v410 = vunpack.c.h.b16 %v223
      %v411 = vunpack.c.l.b16 %v224
      %v412 = vunpack.c.h.b16 %v224
      %v413 = vunpack.c.l.b16 %v225
      %v414 = vunpack.c.h.b16 %v225
      %v415 = vunpack.c.l.b16 %v226
      %v416 = vunpack.c.h.b16 %v226
      %v417 = vunpack.c.l.b16 %v227
      %v418 = vunpack.c.h.b16 %v227
      %v419 = vunpack.c.l.b16 %v228
      %v420 = vunpack.c.h.b16 %v228
      %v421 = vunpack.c.l.b16 %v229
      %v422 = vunpack.c.h.b16 %v229
      %v423 = vunpack.c.l.b16 %v230
      %v424 = vunpack.c.h.b16 %v230
      %v425 = vunpack.c.l.b16 %v231
      %v426 = vunpack.c.h.b16 %v231
      %v427 = vunpack.c.l.b16 %v232
      %v428 = vunpack.c.h.b16 %v232
      %v429 = vunpack.c.l.b16 %v233
      %v430 = vunpack.c.h.b16 %v233
      %v431 = vpack.c.b16 %v401, %v399
      %v432 = vpack.c.b16 %v402, %v400
      %v433 = vpack.c.b16 %v405, %v403
      %v434 = vpack.c.b16 %v406, %v404
      %v435 = vpack.c.b16 %v409, %v407
      %v436 = vpack.c.b16 %v410, %v408
      %v437 = vpack.c.b16 %v413, %v411
      %v438 = vpack.c.b16 %v414, %v412
      %v439 = vpack.c.b16 %v417, %v415
      %v440 = vpack.c.b16 %v418, %v416
      %v441 = vpack.c.b16 %v421, %v419
      %v442 = vpack.c.b16 %v422, %v420
      %v443 = vpack.c.b16 %v425, %v423
      %v444 = vpack.c.b16 %v426, %v424
      %v445 = vpack.c.b16 %v429, %v427
      %v446 = vpack.c.b16 %v430, %v428
      %463 = vmatpush.bf16.msra.mxu0 %v445
      %464 = vmatpush.bf16.msra.mxu0 %v443
      %465 = vmatpush.bf16.msra.mxu0 %v441
      %466 = vmatpush.bf16.msra.mxu0 %v439
      %467 = vmatpush.bf16.msra.mxu0 %v437
      %468 = vmatpush.bf16.msra.mxu0 %v435
      %469 = vmatpush.bf16.msra.mxu0 %v433
      %470 = vmatpush.bf16.msra.mxu0 %v431
      %471 = vmatmul.bf16.gmra.mxu0 %v258
      %v472 = vpop.f32.mrf.mxu0
      %v473 = vadd.f32 %v364, %v472
      %v474 = vpop.f32.mrf.mxu0
      %v475 = vadd.f32 %v366, %v474
      %476 = vdwg.mxu0
      %477 = vmatpush.bf16.msra.mxu0 %v446
      %478 = vmatpush.bf16.msra.mxu0 %v444
      %479 = vmatpush.bf16.msra.mxu0 %v442
      %480 = vmatpush.bf16.msra.mxu0 %v440
      %481 = vmatpush.bf16.msra.mxu0 %v438
      %482 = vmatpush.bf16.msra.mxu0 %v436
      %483 = vmatpush.bf16.msra.mxu0 %v434
      %484 = vmatpush.bf16.msra.mxu0 %v432
      %485 = vmatmul.bf16.gmra.mxu0 %v258
      %v486 = vpop.f32.mrf.mxu0
      %v487 = vadd.f32 %v378, %v486
      %v488 = vpop.f32.mrf.mxu0
      %v489 = vadd.f32 %v380, %v488
      %490 = vdwg.mxu0
      %v491 = vld [vmem:[#allocation2] sm:$0xe]
      %s492 = scalar_lea.vmem %s1, 256
      %v493 = vld [vmem:[%s492] sm:$0xff]
      %v494 = vld [vmem:[%s492 + $0x8] sm:$0xff]
      %v495 = vld [vmem:[%s492 + $0x10] sm:$0xff]
      %v496 = vld [vmem:[%s492 + $0x18] sm:$0xff]
      %v497 = vld [vmem:[%s492 + $0x20] sm:$0xff]
      %v498 = vld [vmem:[%s492 + $0x28] sm:$0xff]
      %v499 = vld [vmem:[%s492 + $0x30] sm:$0xff]
      %v500 = vld [vmem:[%s492 + $0x38] sm:$0xff]
      %v501 = vld [vmem:[%s492 + $0x40] sm:$0xff]
      %v502 = vld [vmem:[%s492 + $0x48] sm:$0xff]
      %v503 = vld [vmem:[%s492 + $0x50] sm:$0xff]
      %v504 = vld [vmem:[%s492 + $0x58] sm:$0xff]
      %v505 = vld [vmem:[%s492 + $0x60] sm:$0xff]
      %v506 = vld [vmem:[%s492 + $0x68] sm:$0xff]
      %v507 = vld [vmem:[%s492 + $0x70] sm:$0xff]
      %v508 = vld [vmem:[%s492 + $0x78] sm:$0xff]
      %v510 = vunpack.c.l.b16 %v491
      %v511 = vpack.c.b16 %v256, %v510
      %vm512 = vcmask 1046528
      %v513 = vrot.slane %v511, 1
      %v514 = vrot.slane %v259, 1
      %v515 = vsel %vm512, %v513, %v514
      %v533 = vunpack.c.l.b16 %v493
      %v534 = vunpack.c.h.b16 %v493
      %v535 = vunpack.c.l.b16 %v494
      %v536 = vunpack.c.h.b16 %v494
      %v537 = vunpack.c.l.b16 %v495
      %v538 = vunpack.c.h.b16 %v495
      %v539 = vunpack.c.l.b16 %v496
      %v540 = vunpack.c.h.b16 %v496
      %v541 = vunpack.c.l.b16 %v497
      %v542 = vunpack.c.h.b16 %v497
      %v543 = vunpack.c.l.b16 %v498
      %v544 = vunpack.c.h.b16 %v498
      %v545 = vunpack.c.l.b16 %v499
      %v546 = vunpack.c.h.b16 %v499
      %v547 = vunpack.c.l.b16 %v500
      %v548 = vunpack.c.h.b16 %v500
      %v549 = vunpack.c.l.b16 %v501
      %v550 = vunpack.c.h.b16 %v501
      %v551 = vunpack.c.l.b16 %v502
      %v552 = vunpack.c.h.b16 %v502
      %v553 = vunpack.c.l.b16 %v503
      %v554 = vunpack.c.h.b16 %v503
      %v555 = vunpack.c.l.b16 %v504
      %v556 = vunpack.c.h.b16 %v504
      %v557 = vunpack.c.l.b16 %v505
      %v558 = vunpack.c.h.b16 %v505
      %v559 = vunpack.c.l.b16 %v506
      %v560 = vunpack.c.h.b16 %v506
      %v561 = vunpack.c.l.b16 %v507
      %v562 = vunpack.c.h.b16 %v507
      %v563 = vunpack.c.l.b16 %v508
      %v564 = vunpack.c.h.b16 %v508
      %v565 = vpack.c.b16 %v535, %v533
      %v566 = vpack.c.b16 %v536, %v534
      %v567 = vpack.c.b16 %v539, %v537
      %v568 = vpack.c.b16 %v540, %v538
      %v569 = vpack.c.b16 %v543, %v541
      %v570 = vpack.c.b16 %v544, %v542
      %v571 = vpack.c.b16 %v547, %v545
      %v572 = vpack.c.b16 %v548, %v546
      %v573 = vpack.c.b16 %v551, %v549
      %v574 = vpack.c.b16 %v552, %v550
      %v575 = vpack.c.b16 %v555, %v553
      %v576 = vpack.c.b16 %v556, %v554
      %v577 = vpack.c.b16 %v559, %v557
      %v578 = vpack.c.b16 %v560, %v558
      %v579 = vpack.c.b16 %v563, %v561
      %v580 = vpack.c.b16 %v564, %v562
      %597 = vmatpush.bf16.msra.mxu0 %v579
      %598 = vmatpush.bf16.msra.mxu0 %v577
      %599 = vmatpush.bf16.msra.mxu0 %v575
      %600 = vmatpush.bf16.msra.mxu0 %v573
      %601 = vmatpush.bf16.msra.mxu0 %v571
      %602 = vmatpush.bf16.msra.mxu0 %v569
      %603 = vmatpush.bf16.msra.mxu0 %v567
      %604 = vmatpush.bf16.msra.mxu0 %v565
      %605 = vmatmul.bf16.gmra.mxu0 %v515
      %v606 = vpop.f32.mrf.mxu0
      %v607 = vadd.f32 0.0, %v606
      %v608 = vpop.f32.mrf.mxu0
      %v609 = vadd.f32 0.0, %v608
      %610 = vdwg.mxu0
      %611 = vmatpush.bf16.msra.mxu0 %v580
      %612 = vmatpush.bf16.msra.mxu0 %v578
      %613 = vmatpush.bf16.msra.mxu0 %v576
      %614 = vmatpush.bf16.msra.mxu0 %v574
      %615 = vmatpush.bf16.msra.mxu0 %v572
      %616 = vmatpush.bf16.msra.mxu0 %v570
      %617 = vmatpush.bf16.msra.mxu0 %v568
      %618 = vmatpush.bf16.msra.mxu0 %v566
      %619 = vmatmul.bf16.gmra.mxu0 %v515
      %v620 = vpop.f32.mrf.mxu0
      %v621 = vadd.f32 0.0, %v620
      %v622 = vpop.f32.mrf.mxu0
      %v623 = vadd.f32 0.0, %v622
      %624 = vdwg.mxu0
      %v625 = vadd.f32 %v473, %v607
      %v626 = vadd.f32 %v487, %v621
      %v627 = vadd.f32 %v475, %v609
      %v628 = vadd.f32 %v489, %v623
      %v629 = vld [vmem:[#allocation2 + $0x8] sm:$0x3]
      %s630 = scalar_lea.vmem %s1, 384
      %v631 = vld [vmem:[%s630] sm:$0xff]
      %v632 = vld [vmem:[%s630 + $0x8] sm:$0xff]
      %v633 = vld [vmem:[%s630 + $0x10] sm:$0xff]
      %v634 = vld [vmem:[%s630 + $0x18] sm:$0xff]
      %v635 = vld [vmem:[%s630 + $0x20] sm:$0xff]
      %v636 = vld [vmem:[%s630 + $0x28] sm:$0xff]
      %v637 = vld [vmem:[%s630 + $0x30] sm:$0xff]
      %v638 = vld [vmem:[%s630 + $0x38] sm:$0xff]
      %v639 = vld [vmem:[%s630 + $0x40] sm:$0xff]
      %v640 = vld [vmem:[%s630 + $0x48] sm:$0xff]
      %v641 = vld [vmem:[%s630 + $0x50] sm:$0xff]
      %v642 = vld [vmem:[%s630 + $0x58] sm:$0xff]
      %v643 = vld [vmem:[%s630 + $0x60] sm:$0xff]
      %v644 = vld [vmem:[%s630 + $0x68] sm:$0xff]
      %v645 = vld [vmem:[%s630 + $0x70] sm:$0xff]
      %v646 = vld [vmem:[%s630 + $0x78] sm:$0xff]
      %v648 = vunpack.c.l.b16 %v629
      %v649 = vpack.c.b16 %v648, %v648
      %vm650 = vsmask.f32 6400
      %v652 = vshrl.u32 %v511, 16
      %v654 = vrot.slane %v652, 1
      %v655 = vshll.u32 %v511, 16
      %v657 = vrot.slane %v655, 2
      %v658 = vor.u32 %v654, %v657
      %v660 = vshrl.u32 %v649, 16
      %v662 = vrot.slane %v660, 1
      %v663 = vshll.u32 %v649, 16
      %v665 = vrot.slane %v663, 2
      %v666 = vor.u32 %v662, %v665
      %v667 = vsel %vm650, %v658, %v666
      %v685 = vunpack.c.l.b16 %v631
      %v686 = vunpack.c.h.b16 %v631
      %v687 = vunpack.c.l.b16 %v632
      %v688 = vunpack.c.h.b16 %v632
      %v689 = vunpack.c.l.b16 %v633
      %v690 = vunpack.c.h.b16 %v633
      %v691 = vunpack.c.l.b16 %v634
      %v692 = vunpack.c.h.b16 %v634
      %v693 = vunpack.c.l.b16 %v635
      %v694 = vunpack.c.h.b16 %v635
      %v695 = vunpack.c.l.b16 %v636
      %v696 = vunpack.c.h.b16 %v636
      %v697 = vunpack.c.l.b16 %v637
      %v698 = vunpack.c.h.b16 %v637
      %v699 = vunpack.c.l.b16 %v638
      %v700 = vunpack.c.h.b16 %v638
      %v701 = vunpack.c.l.b16 %v639
      %v702 = vunpack.c.h.b16 %v639
      %v703 = vunpack.c.l.b16 %v640
      %v704 = vunpack.c.h.b16 %v640
      %v705 = vunpack.c.l.b16 %v641
      %v706 = vunpack.c.h.b16 %v641
      %v707 = vunpack.c.l.b16 %v642
      %v708 = vunpack.c.h.b16 %v642
      %v709 = vunpack.c.l.b16 %v643
      %v710 = vunpack.c.h.b16 %v643
      %v711 = vunpack.c.l.b16 %v644
      %v712 = vunpack.c.h.b16 %v644
      %v713 = vunpack.c.l.b16 %v645
      %v714 = vunpack.c.h.b16 %v645
      %v715 = vunpack.c.l.b16 %v646
      %v716 = vunpack.c.h.b16 %v646
      %v717 = vpack.c.b16 %v687, %v685
      %v718 = vpack.c.b16 %v688, %v686
      %v719 = vpack.c.b16 %v691, %v689
      %v720 = vpack.c.b16 %v692, %v690
      %v721 = vpack.c.b16 %v695, %v693
      %v722 = vpack.c.b16 %v696, %v694
      %v723 = vpack.c.b16 %v699, %v697
      %v724 = vpack.c.b16 %v700, %v698
      %v725 = vpack.c.b16 %v703, %v701
      %v726 = vpack.c.b16 %v704, %v702
      %v727 = vpack.c.b16 %v707, %v705
      %v728 = vpack.c.b16 %v708, %v706
      %v729 = vpack.c.b16 %v711, %v709
      %v730 = vpack.c.b16 %v712, %v710
      %v731 = vpack.c.b16 %v715, %v713
      %v732 = vpack.c.b16 %v716, %v714
      %749 = vmatpush.bf16.msra.mxu0 %v731
      %750 = vmatpush.bf16.msra.mxu0 %v729
      %751 = vmatpush.bf16.msra.mxu0 %v727
      %752 = vmatpush.bf16.msra.mxu0 %v725
      %753 = vmatpush.bf16.msra.mxu0 %v723
      %754 = vmatpush.bf16.msra.mxu0 %v721
      %755 = vmatpush.bf16.msra.mxu0 %v719
      %756 = vmatpush.bf16.msra.mxu0 %v717
      %757 = vmatmul.bf16.gmra.mxu0 %v667
      %v758 = vpop.f32.mrf.mxu0
      %v759 = vadd.f32 0.0, %v758
      %v760 = vpop.f32.mrf.mxu0
      %v761 = vadd.f32 0.0, %v760
      %762 = vdwg.mxu0
      %763 = vmatpush.bf16.msra.mxu0 %v732
      %764 = vmatpush.bf16.msra.mxu0 %v730
      %765 = vmatpush.bf16.msra.mxu0 %v728
      %766 = vmatpush.bf16.msra.mxu0 %v726
      %767 = vmatpush.bf16.msra.mxu0 %v724
      %768 = vmatpush.bf16.msra.mxu0 %v722
      %769 = vmatpush.bf16.msra.mxu0 %v720
      %770 = vmatpush.bf16.msra.mxu0 %v718
      %771 = vmatmul.bf16.gmra.mxu0 %v667
      %v772 = vpop.f32.mrf.mxu0
      %v773 = vadd.f32 0.0, %v772
      %v774 = vpop.f32.mrf.mxu0
      %v775 = vadd.f32 0.0, %v774
      %776 = vdwg.mxu0
      %v777 = vadd.f32 %v625, %v759
      %v778 = vadd.f32 %v626, %v773
      %v779 = vadd.f32 %v627, %v761
      %v780 = vadd.f32 %v628, %v775
      %v781 = vld [vmem:[#allocation2] sm:$0xc]
      %s782 = scalar_lea.vmem %s1, 512
      %v783 = vld [vmem:[%s782] sm:$0xff]
      %v784 = vld [vmem:[%s782 + $0x8] sm:$0xff]
      %v785 = vld [vmem:[%s782 + $0x10] sm:$0xff]
      %v786 = vld [vmem:[%s782 + $0x18] sm:$0xff]
      %v787 = vld [vmem:[%s782 + $0x20] sm:$0xff]
      %v788 = vld [vmem:[%s782 + $0x28] sm:$0xff]
      %v789 = vld [vmem:[%s782 + $0x30] sm:$0xff]
      %v790 = vld [vmem:[%s782 + $0x38] sm:$0xff]
      %v791 = vld [vmem:[%s782 + $0x40] sm:$0xff]
      %v792 = vld [vmem:[%s782 + $0x48] sm:$0xff]
      %v793 = vld [vmem:[%s782 + $0x50] sm:$0xff]
      %v794 = vld [vmem:[%s782 + $0x58] sm:$0xff]
      %v795 = vld [vmem:[%s782 + $0x60] sm:$0xff]
      %v796 = vld [vmem:[%s782 + $0x68] sm:$0xff]
      %v797 = vld [vmem:[%s782 + $0x70] sm:$0xff]
      %v798 = vld [vmem:[%s782 + $0x78] sm:$0xff]
      %v800 = vunpack.c.l.b16 %v781
      %v801 = vpack.c.b16 %v256, %v800
      %vm802 = vcmask 1045504
      %v803 = vrot.slane %v801, 2
      %v804 = vrot.slane %v649, 2
      %v805 = vsel %vm802, %v803, %v804
      %v823 = vunpack.c.l.b16 %v783
      %v824 = vunpack.c.h.b16 %v783
      %v825 = vunpack.c.l.b16 %v784
      %v826 = vunpack.c.h.b16 %v784
      %v827 = vunpack.c.l.b16 %v785
      %v828 = vunpack.c.h.b16 %v785
      %v829 = vunpack.c.l.b16 %v786
      %v830 = vunpack.c.h.b16 %v786
      %v831 = vunpack.c.l.b16 %v787
      %v832 = vunpack.c.h.b16 %v787
      %v833 = vunpack.c.l.b16 %v788
      %v834 = vunpack.c.h.b16 %v788
      %v835 = vunpack.c.l.b16 %v789
      %v836 = vunpack.c.h.b16 %v789
      %v837 = vunpack.c.l.b16 %v790
      %v838 = vunpack.c.h.b16 %v790
      %v839 = vunpack.c.l.b16 %v791
      %v840 = vunpack.c.h.b16 %v791
      %v841 = vunpack.c.l.b16 %v792
      %v842 = vunpack.c.h.b16 %v792
      %v843 = vunpack.c.l.b16 %v793
      %v844 = vunpack.c.h.b16 %v793
      %v845 = vunpack.c.l.b16 %v794
      %v846 = vunpack.c.h.b16 %v794
      %v847 = vunpack.c.l.b16 %v795
      %v848 = vunpack.c.h.b16 %v795
      %v849 = vunpack.c.l.b16 %v796
      %v850 = vunpack.c.h.b16 %v796
      %v851 = vunpack.c.l.b16 %v797
      %v852 = vunpack.c.h.b16 %v797
      %v853 = vunpack.c.l.b16 %v798
      %v854 = vunpack.c.h.b16 %v798
      %v855 = vpack.c.b16 %v825, %v823
      %v856 = vpack.c.b16 %v826, %v824
      %v857 = vpack.c.b16 %v829, %v827
      %v858 = vpack.c.b16 %v830, %v828
      %v859 = vpack.c.b16 %v833, %v831
      %v860 = vpack.c.b16 %v834, %v832
      %v861 = vpack.c.b16 %v837, %v835
      %v862 = vpack.c.b16 %v838, %v836
      %v863 = vpack.c.b16 %v841, %v839
      %v864 = vpack.c.b16 %v842, %v840
      %v865 = vpack.c.b16 %v845, %v843
      %v866 = vpack.c.b16 %v846, %v844
      %v867 = vpack.c.b16 %v849, %v847
      %v868 = vpack.c.b16 %v850, %v848
      %v869 = vpack.c.b16 %v853, %v851
      %v870 = vpack.c.b16 %v854, %v852
      %887 = vmatpush.bf16.msra.mxu0 %v869
      %888 = vmatpush.bf16.msra.mxu0 %v867
      %889 = vmatpush.bf16.msra.mxu0 %v865
      %890 = vmatpush.bf16.msra.mxu0 %v863
      %891 = vmatpush.bf16.msra.mxu0 %v861
      %892 = vmatpush.bf16.msra.mxu0 %v859
      %893 = vmatpush.bf16.msra.mxu0 %v857
      %894 = vmatpush.bf16.msra.mxu0 %v855
      %895 = vmatmul.bf16.gmra.mxu0 %v805
      %v896 = vpop.f32.mrf.mxu0
      %v897 = vadd.f32 0.0, %v896
      %v898 = vpop.f32.mrf.mxu0
      %v899 = vadd.f32 0.0, %v898
      %900 = vdwg.mxu0
      %901 = vmatpush.bf16.msra.mxu0 %v870
      %902 = vmatpush.bf16.msra.mxu0 %v868
      %903 = vmatpush.bf16.msra.mxu0 %v866
      %904 = vmatpush.bf16.msra.mxu0 %v864
      %905 = vmatpush.bf16.msra.mxu0 %v862
      %906 = vmatpush.bf16.msra.mxu0 %v860
      %907 = vmatpush.bf16.msra.mxu0 %v858
      %908 = vmatpush.bf16.msra.mxu0 %v856
      %909 = vmatmul.bf16.gmra.mxu0 %v805
      %v910 = vpop.f32.mrf.mxu0
      %v911 = vadd.f32 0.0, %v910
      %v912 = vpop.f32.mrf.mxu0
      %v913 = vadd.f32 0.0, %v912
      %914 = vdwg.mxu0
      %v915 = vadd.f32 %v777, %v897
      %v916 = vadd.f32 %v778, %v911
      %v917 = vadd.f32 %v779, %v899
      %v918 = vadd.f32 %v780, %v913
      %v919 = vld [vmem:[#allocation2 + $0x8] sm:$0x7]
      %s920 = scalar_lea.vmem %s1, 640
      %v921 = vld [vmem:[%s920] sm:$0xff]
      %v922 = vld [vmem:[%s920 + $0x8] sm:$0xff]
      %v923 = vld [vmem:[%s920 + $0x10] sm:$0xff]
      %v924 = vld [vmem:[%s920 + $0x18] sm:$0xff]
      %v925 = vld [vmem:[%s920 + $0x20] sm:$0xff]
      %v926 = vld [vmem:[%s920 + $0x28] sm:$0xff]
      %v927 = vld [vmem:[%s920 + $0x30] sm:$0xff]
      %v928 = vld [vmem:[%s920 + $0x38] sm:$0xff]
      %v929 = vld [vmem:[%s920 + $0x40] sm:$0xff]
      %v930 = vld [vmem:[%s920 + $0x48] sm:$0xff]
      %v931 = vld [vmem:[%s920 + $0x50] sm:$0xff]
      %v932 = vld [vmem:[%s920 + $0x58] sm:$0xff]
      %v933 = vld [vmem:[%s920 + $0x60] sm:$0xff]
      %v934 = vld [vmem:[%s920 + $0x68] sm:$0xff]
      %v935 = vld [vmem:[%s920 + $0x70] sm:$0xff]
      %v936 = vld [vmem:[%s920 + $0x78] sm:$0xff]
      %v938 = vunpack.c.l.b16 %v919
      %v939 = vpack.c.b16 %v938, %v938
      %vm940 = vsmask.f32 5376
      %v942 = vshrl.u32 %v801, 16
      %v944 = vrot.slane %v942, 2
      %v945 = vshll.u32 %v801, 16
      %v947 = vrot.slane %v945, 3
      %v948 = vor.u32 %v944, %v947
      %v950 = vshrl.u32 %v939, 16
      %v952 = vrot.slane %v950, 2
      %v953 = vshll.u32 %v939, 16
      %v955 = vrot.slane %v953, 3
      %v956 = vor.u32 %v952, %v955
      %v957 = vsel %vm940, %v948, %v956
      %v975 = vunpack.c.l.b16 %v921
      %v976 = vunpack.c.h.b16 %v921
      %v977 = vunpack.c.l.b16 %v922
      %v978 = vunpack.c.h.b16 %v922
      %v979 = vunpack.c.l.b16 %v923
      %v980 = vunpack.c.h.b16 %v923
      %v981 = vunpack.c.l.b16 %v924
      %v982 = vunpack.c.h.b16 %v924
      %v983 = vunpack.c.l.b16 %v925
      %v984 = vunpack.c.h.b16 %v925
      %v985 = vunpack.c.l.b16 %v926
      %v986 = vunpack.c.h.b16 %v926
      %v987 = vunpack.c.l.b16 %v927
      %v988 = vunpack.c.h.b16 %v927
      %v989 = vunpack.c.l.b16 %v928
      %v990 = vunpack.c.h.b16 %v928
      %v991 = vunpack.c.l.b16 %v929
      %v992 = vunpack.c.h.b16 %v929
      %v993 = vunpack.c.l.b16 %v930
      %v994 = vunpack.c.h.b16 %v930
      %v995 = vunpack.c.l.b16 %v931
      %v996 = vunpack.c.h.b16 %v931
      %v997 = vunpack.c.l.b16 %v932
      %v998 = vunpack.c.h.b16 %v932
      %v999 = vunpack.c.l.b16 %v933
      %v1000 = vunpack.c.h.b16 %v933
      %v1001 = vunpack.c.l.b16 %v934
      %v1002 = vunpack.c.h.b16 %v934
      %v1003 = vunpack.c.l.b16 %v935
      %v1004 = vunpack.c.h.b16 %v935
      %v1005 = vunpack.c.l.b16 %v936
      %v1006 = vunpack.c.h.b16 %v936
      %v1007 = vpack.c.b16 %v977, %v975
      %v1008 = vpack.c.b16 %v978, %v976
      %v1009 = vpack.c.b16 %v981, %v979
      %v1010 = vpack.c.b16 %v982, %v980
      %v1011 = vpack.c.b16 %v985, %v983
      %v1012 = vpack.c.b16 %v986, %v984
      %v1013 = vpack.c.b16 %v989, %v987
      %v1014 = vpack.c.b16 %v990, %v988
      %v1015 = vpack.c.b16 %v993, %v991
      %v1016 = vpack.c.b16 %v994, %v992
      %v1017 = vpack.c.b16 %v997, %v995
      %v1018 = vpack.c.b16 %v998, %v996
      %v1019 = vpack.c.b16 %v1001, %v999
      %v1020 = vpack.c.b16 %v1002, %v1000
      %v1021 = vpack.c.b16 %v1005, %v1003
      %v1022 = vpack.c.b16 %v1006, %v1004
      %1039 = vmatpush.bf16.msra.mxu0 %v1021
      %1040 = vmatpush.bf16.msra.mxu0 %v1019
      %1041 = vmatpush.bf16.msra.mxu0 %v1017
      %1042 = vmatpush.bf16.msra.mxu0 %v1015
      %1043 = vmatpush.bf16.msra.mxu0 %v1013
      %1044 = vmatpush.bf16.msra.mxu0 %v1011
      %1045 = vmatpush.bf16.msra.mxu0 %v1009
      %1046 = vmatpush.bf16.msra.mxu0 %v1007
      %1047 = vmatmul.bf16.gmra.mxu0 %v957
      %v1048 = vpop.f32.mrf.mxu0
      %v1049 = vadd.f32 0.0, %v1048
      %v1050 = vpop.f32.mrf.mxu0
      %v1051 = vadd.f32 0.0, %v1050
      %1052 = vdwg.mxu0
      %1053 = vmatpush.bf16.msra.mxu0 %v1022
      %1054 = vmatpush.bf16.msra.mxu0 %v1020
      %1055 = vmatpush.bf16.msra.mxu0 %v1018
      %1056 = vmatpush.bf16.msra.mxu0 %v1016
      %1057 = vmatpush.bf16.msra.mxu0 %v1014
      %1058 = vmatpush.bf16.msra.mxu0 %v1012
      %1059 = vmatpush.bf16.msra.mxu0 %v1010
      %1060 = vmatpush.bf16.msra.mxu0 %v1008
      %1061 = vmatmul.bf16.gmra.mxu0 %v957
      %v1062 = vpop.f32.mrf.mxu0
      %v1063 = vadd.f32 0.0, %v1062
      %v1064 = vpop.f32.mrf.mxu0
      %v1065 = vadd.f32 0.0, %v1064
      %1066 = vdwg.mxu0
      %v1067 = vadd.f32 %v915, %v1049
      %v1068 = vadd.f32 %v916, %v1063
      %v1069 = vadd.f32 %v917, %v1051
      %v1070 = vadd.f32 %v918, %v1065
      %v1071 = vld [vmem:[#allocation2] sm:$0x8]
      %s1072 = scalar_lea.vmem %s1, 768
      %v1073 = vld [vmem:[%s1072] sm:$0xff]
      %v1074 = vld [vmem:[%s1072 + $0x8] sm:$0xff]
      %v1075 = vld [vmem:[%s1072 + $0x10] sm:$0xff]
      %v1076 = vld [vmem:[%s1072 + $0x18] sm:$0xff]
      %v1077 = vld [vmem:[%s1072 + $0x20] sm:$0xff]
      %v1078 = vld [vmem:[%s1072 + $0x28] sm:$0xff]
      %v1079 = vld [vmem:[%s1072 + $0x30] sm:$0xff]
      %v1080 = vld [vmem:[%s1072 + $0x38] sm:$0xff]
      %v1081 = vld [vmem:[%s1072 + $0x40] sm:$0xff]
      %v1082 = vld [vmem:[%s1072 + $0x48] sm:$0xff]
      %v1083 = vld [vmem:[%s1072 + $0x50] sm:$0xff]
      %v1084 = vld [vmem:[%s1072 + $0x58] sm:$0xff]
      %v1085 = vld [vmem:[%s1072 + $0x60] sm:$0xff]
      %v1086 = vld [vmem:[%s1072 + $0x68] sm:$0xff]
      %v1087 = vld [vmem:[%s1072 + $0x70] sm:$0xff]
      %v1088 = vld [vmem:[%s1072 + $0x78] sm:$0xff]
      %v1090 = vunpack.c.l.b16 %v1071
      %v1091 = vpack.c.b16 %v256, %v1090
      %vm1092 = vcmask 1044480
      %v1093 = vrot.slane %v1091, 3
      %v1094 = vrot.slane %v939, 3
      %v1095 = vsel %vm1092, %v1093, %v1094
      %v1113 = vunpack.c.l.b16 %v1073
      %v1114 = vunpack.c.h.b16 %v1073
      %v1115 = vunpack.c.l.b16 %v1074
      %v1116 = vunpack.c.h.b16 %v1074
      %v1117 = vunpack.c.l.b16 %v1075
      %v1118 = vunpack.c.h.b16 %v1075
      %v1119 = vunpack.c.l.b16 %v1076
      %v1120 = vunpack.c.h.b16 %v1076
      %v1121 = vunpack.c.l.b16 %v1077
      %v1122 = vunpack.c.h.b16 %v1077
      %v1123 = vunpack.c.l.b16 %v1078
      %v1124 = vunpack.c.h.b16 %v1078
      %v1125 = vunpack.c.l.b16 %v1079
      %v1126 = vunpack.c.h.b16 %v1079
      %v1127 = vunpack.c.l.b16 %v1080
      %v1128 = vunpack.c.h.b16 %v1080
      %v1129 = vunpack.c.l.b16 %v1081
      %v1130 = vunpack.c.h.b16 %v1081
      %v1131 = vunpack.c.l.b16 %v1082
      %v1132 = vunpack.c.h.b16 %v1082
      %v1133 = vunpack.c.l.b16 %v1083
      %v1134 = vunpack.c.h.b16 %v1083
      %v1135 = vunpack.c.l.b16 %v1084
      %v1136 = vunpack.c.h.b16 %v1084
      %v1137 = vunpack.c.l.b16 %v1085
      %v1138 = vunpack.c.h.b16 %v1085
      %v1139 = vunpack.c.l.b16 %v1086
      %v1140 = vunpack.c.h.b16 %v1086
      %v1141 = vunpack.c.l.b16 %v1087
      %v1142 = vunpack.c.h.b16 %v1087
      %v1143 = vunpack.c.l.b16 %v1088
      %v1144 = vunpack.c.h.b16 %v1088
      %v1145 = vpack.c.b16 %v1115, %v1113
      %v1146 = vpack.c.b16 %v1116, %v1114
      %v1147 = vpack.c.b16 %v1119, %v1117
      %v1148 = vpack.c.b16 %v1120, %v1118
      %v1149 = vpack.c.b16 %v1123, %v1121
      %v1150 = vpack.c.b16 %v1124, %v1122
      %v1151 = vpack.c.b16 %v1127, %v1125
      %v1152 = vpack.c.b16 %v1128, %v1126
      %v1153 = vpack.c.b16 %v1131, %v1129
      %v1154 = vpack.c.b16 %v1132, %v1130
      %v1155 = vpack.c.b16 %v1135, %v1133
      %v1156 = vpack.c.b16 %v1136, %v1134
      %v1157 = vpack.c.b16 %v1139, %v1137
      %v1158 = vpack.c.b16 %v1140, %v1138
      %v1159 = vpack.c.b16 %v1143, %v1141
      %v1160 = vpack.c.b16 %v1144, %v1142
      %1177 = vmatpush.bf16.msra.mxu0 %v1159
      %1178 = vmatpush.bf16.msra.mxu0 %v1157
      %1179 = vmatpush.bf16.msra.mxu0 %v1155
      %1180 = vmatpush.bf16.msra.mxu0 %v1153
      %1181 = vmatpush.bf16.msra.mxu0 %v1151
      %1182 = vmatpush.bf16.msra.mxu0 %v1149
      %1183 = vmatpush.bf16.msra.mxu0 %v1147
      %1184 = vmatpush.bf16.msra.mxu0 %v1145
      %1185 = vmatmul.bf16.gmra.mxu0 %v1095
      %v1186 = vpop.f32.mrf.mxu0
      %v1187 = vadd.f32 0.0, %v1186
      %v1188 = vpop.f32.mrf.mxu0
      %v1189 = vadd.f32 0.0, %v1188
      %1190 = vdwg.mxu0
      %1191 = vmatpush.bf16.msra.mxu0 %v1160
      %1192 = vmatpush.bf16.msra.mxu0 %v1158
      %1193 = vmatpush.bf16.msra.mxu0 %v1156
      %1194 = vmatpush.bf16.msra.mxu0 %v1154
      %1195 = vmatpush.bf16.msra.mxu0 %v1152
      %1196 = vmatpush.bf16.msra.mxu0 %v1150
      %1197 = vmatpush.bf16.msra.mxu0 %v1148
      %1198 = vmatpush.bf16.msra.mxu0 %v1146
      %1199 = vmatmul.bf16.gmra.mxu0 %v1095
      %v1200 = vpop.f32.mrf.mxu0
      %v1201 = vadd.f32 0.0, %v1200
      %v1202 = vpop.f32.mrf.mxu0
      %v1203 = vadd.f32 0.0, %v1202
      %1204 = vdwg.mxu0
      %v1205 = vadd.f32 %v1067, %v1187
      %v1206 = vadd.f32 %v1068, %v1201
      %v1207 = vadd.f32 %v1069, %v1189
      %v1208 = vadd.f32 %v1070, %v1203
      %v1209 = vld [vmem:[%s2] sm:$0x3]
      %v1211 = vperm.slane %v1209, 0
      %v1212 = vperm.slane %v1209, 1
      %v1215 = vadd.f32 %v1205, %v1211
      %v1216 = vadd.f32 %v1206, %v1212
      %v1217 = vadd.f32 %v1207, %v1211
      %v1218 = vadd.f32 %v1208, %v1212
      %v1219 = vmax.f32 %v1215, 0.0
      %v1220 = vmax.f32 %v1216, 0.0
      %v1221 = vmax.f32 %v1217, 0.0
      %v1222 = vmax.f32 %v1218, 0.0
      %1223 = vst [vmem:[%s170] sm:$0xff] %v1219
      %1224 = vst [vmem:[%s170 + $0x8] sm:$0xff] %v1220
      %1225 = vst [vmem:[%s170 + $0x10] sm:$0xff] %v1221
      %1226 = vst [vmem:[%s170 + $0x18] sm:$0xff] %v1222
      %p1227 = scmp.lt.s32.totalorder %s14, 1
      %s1228 = scalar_select %p1227, %s14, 1
      %s1229 = smul.addr %s1228, 4
      %s1230 = smul.addr %s1229, 8
      %s1231 = scalar_lea.vmem %s3, %s1230
      // Predicated region
      $region33: #{sa_module_head_forward.1} parent=31 // pred_check
        %p1232 = pneg %p100
      $region34: #{sa_module_head_forward.1} parent=31 // pred_check_branch
        %1234 = sbr.rel (%p1232) target = $region36
      $region35: #{sa_module_head_forward.1} parent=31 // pred_region
        _
      $region36: #{sa_module_head_forward.1} parent=31 // pred_fallthru
        _
    $region32: #{sa_module_head_forward.1} parent=5 // pred_fallthru
      _
    %p1235 = scmp.le.s32.totalorder 2, %s9
    // Predicated region
    $region37: #{sa_module_head_forward.1} parent=5 // pred_check
      %p1236 = pneg %p1235
    $region38: #{sa_module_head_forward.1} parent=5 // pred_check_branch
      %1238 = sbr.rel (%p1236) target = $region40
    $region39: #{sa_module_head_forward.1} parent=5 // pred_region
      %s1239 = ssub.s32 %s9, 2
      // Predicated region
      $region41: #{sa_module_head_forward.1} parent=39 // pred_check
        %p1240 = pneg %p106
      $region42: #{sa_module_head_forward.1} parent=39 // pred_check_branch
        %1242 = sbr.rel (%p1240) target = $region44
      $region43: #{sa_module_head_forward.1} parent=39 // pred_region
        %p1243 = scmp.lt.s32.totalorder %s15, 1
        %s1244 = scalar_select %p1243, %s15, 1
        %s1245 = smul.addr %s1244, 4
        %s1246 = smul.addr %s1245, 8
        %s1247 = scalar_lea.vmem %s3, %s1246
      $region44: #{sa_module_head_forward.1} parent=39 // pred_fallthru
        _
    $region40: #{sa_module_head_forward.1} parent=5 // pred_fallthru
      _
  $region6: #{sa_module_head_forward.1} parent=0 // loop_footer
    %s13 = sadd.s32 1, %s9
  $region7: #{sa_module_head_forward.1} parent=0 // loop_footer_branch
    %8 = sbr.rel target = $region3
  $region8: #{sa_module_head_forward.1} parent=0 // loop_exit
    _

</llo_original>
